<compile_context>
chip_gen: v7x
topology: tpu7x:2x2x1
jax: 0.10.0
libtpu: 0.0.40
codegen_flags: <defaults>
</compile_context>

<pallas_src>
import functools

import jax
import jax.numpy as jnp
from jax.experimental import pallas as pl
from jax.experimental.pallas import tpu as pltpu

EPS = 1e-5  # nn.LayerNorm default


def _spiking_ln_kernel(x0_ref, y0_ref, inp_ref, w_ref, b_ref,
                       out_ref, x_ref, y_ref):
    """One (row-tile, timestep) grid point.

    x_ref / y_ref are state outputs; their block index is constant along the
    innermost ("arbitrary") timestep axis, so they stay resident in VMEM and
    act as the running-sum / previous-output carry.
    """
    t = pl.program_id(1)

    # Load incoming state on the first timestep of this row tile.
    @pl.when(t == 0)
    def _():
        x_ref[...] = x0_ref[...]
        y_ref[...] = y0_ref[...]

    # Running-sum update (f32 state).
    x_new = x_ref[...] + inp_ref[...].astype(jnp.float32)

    # LayerNorm over the last axis.  NOTE: keep the two-pass (centered)
    # variance; E[x^2]-mean^2 would cancel catastrophically as X grows.
    mean = jnp.mean(x_new, axis=-1, keepdims=True)
    centered = x_new - mean
    var = jnp.mean(centered * centered, axis=-1, keepdims=True)
    y = centered * jax.lax.rsqrt(var + EPS) * w_ref[...] + b_ref[...]

    out_ref[...] = (y - y_ref[...]).astype(out_ref.dtype)
    x_ref[...] = x_new
    y_ref[...] = y


def _round_up(x, m):
    return (x + m - 1) // m * m


def _tpu_info():
    """(vmem_capacity_bytes, num_tensorcores) with safe fallbacks."""
    kind = ""
    try:
        kind = jax.devices()[0].device_kind.lower()
    except Exception:  # pragma: no cover - CPU / odd backends
        pass
    vmem = None
    try:
        vmem = int(pltpu.get_tpu_info().vmem_capacity_bytes)
    except Exception:
        vmem = None
    is_v7 = "v7" in kind
    if vmem is None or vmem <= 0:
        vmem = (64 if is_v7 else 128) * 1024 * 1024
    # Only v7x (of the v5e/v6e/v7x targets) has 2 TensorCores per chip.
    num_tc = 2 if is_v7 else 1
    return vmem, num_tc


def _vmem_budget(vmem_bytes):
    """Pipeline-buffer budget: ~70% of VMEM, leaving >=24 MiB headroom."""
    return min(int(vmem_bytes * 0.70), vmem_bytes - 24 * 1024 * 1024)


def _choose_tm(rows, dim, in_itemsize, *, vmem_bytes, num_tc,
               single_buffer_state):
    """Pick a row tile: as big as the VMEM budget / block-size sweet spot allow.

    Per-row VMEM footprint across all pipeline buffers:
      x0, y0, x, y : f32, `state_bufs` buffers each
      inp, out     : input dtype, double-buffered
    The row tile is also capped so each streamed (tm, D) block is ~4 MiB
    (measured ~85-86% of HBM roofline), and rounded to the dtype's sublane
    packing so stores stay unmasked.
    """
    sub = max(8, 32 // in_itemsize)           # 8 f32, 16 bf16, 32 int8/fp8
    state_bufs = 1 if single_buffer_state else 2
    per_row = dim * (4 * 4 * state_bufs + 2 * 2 * in_itemsize)

    budget = _vmem_budget(vmem_bytes)
    cap_budget = max(sub, (budget // per_row) // sub * sub)
    cap_block = max(sub, ((4 * 1024 * 1024) // (dim * in_itemsize)) // sub * sub)
    cap = min(cap_budget, cap_block)

    if rows <= cap:
        if num_tc >= 2 and rows > sub:
            # Megacore: >=2 row tiles so the "parallel" axis shards across TCs.
            return min(_round_up(-(-rows // num_tc), sub), rows)
        # Single-TC chips: one full-extent tile (block == full dim is legal
        # even when rows isn't a sublane multiple).
        return rows

    n_tiles = -(-rows // cap)
    if num_tc >= 2:
        n_tiles = _round_up(n_tiles, num_tc)   # even split across both TCs
    return _round_up(-(-rows // n_tiles), sub)


@functools.partial(
    jax.jit,
    static_argnames=("tm", "single_buffer_state", "vmem_limit_bytes"),
    donate_argnums=(0, 1))
def _spiking_ln_call(x_state, y_pre, inp_seq, weight, bias, *,
                     tm, single_buffer_state, vmem_limit_bytes):
    T, R, D = inp_seq.shape
    x_state = x_state.astype(jnp.float32)
    y_pre = y_pre.astype(jnp.float32)
    w2 = weight.reshape(1, D).astype(jnp.float32)
    b2 = bias.reshape(1, D).astype(jnp.float32)

    state_kwargs = {}
    if single_buffer_state:
        # State blocks change index only once per row tile -> double-buffering
        # them wastes VMEM (matters on v7x's 64 MiB); keep a single buffer.
        state_kwargs = dict(pipeline_mode=pl.Buffered(1))

    state_spec = pl.BlockSpec((tm, D), lambda i, t: (i, 0), **state_kwargs)
    # Streamed per-timestep blocks.  (If a trace shows exposed input DMA on
    # v7x, pipeline_mode=pl.Buffered(3) here is the next lever.)
    seq_spec = pl.BlockSpec((None, tm, D), lambda i, t: (t, i, 0))
    param_spec = pl.BlockSpec((1, D), lambda i, t: (0, 0))

    grid = (pl.cdiv(R, tm), T)

    out_seq, x_new, y_new = pl.pallas_call(
        _spiking_ln_kernel,
        out_shape=(
            jax.ShapeDtypeStruct((T, R, D), inp_seq.dtype),
            jax.ShapeDtypeStruct((R, D), jnp.float32),
            jax.ShapeDtypeStruct((R, D), jnp.float32),
        ),
        grid_spec=pltpu.PrefetchScalarGridSpec(
            num_scalar_prefetch=0,
            grid=grid,
            in_specs=[state_spec, state_spec, seq_spec, param_spec, param_spec],
            out_specs=[seq_spec, state_spec, state_spec],
        ),
        # In-place state update: x_state -> new_x_state, y_pre -> new_y_pre.
        input_output_aliases={0: 1, 1: 2},
        compiler_params=pltpu.CompilerParams(
            dimension_semantics=("parallel", "arbitrary"),
            vmem_limit_bytes=vmem_limit_bytes,
        ),
    )(x_state, y_pre, inp_seq, w2, b2)
    return out_seq, x_new, y_new


def spiking_layernorm_forward(x_state, y_pre, inp_seq, weight, bias, *, tm=None):
    """Run T Spiking_LayerNorm timesteps in one fused kernel.

    Args:
      x_state: (R, D) running-sum state X (zeros after reset()).
      y_pre:   (R, D) previous LayerNorm output (zeros after reset()).
      inp_seq: (T, R, D) inputs for T consecutive timesteps
               (R = flattened leading batch/seq dims).
      weight:  (D,) LayerNorm scale.
      bias:    (D,) LayerNorm shift.
      tm:      optional row-tile override.

    Returns:
      (out_seq, new_x_state, new_y_pre):
        out_seq     (T, R, D) in inp_seq.dtype  -- per-timestep module outputs.
        new_x_state (R, D) float32
        new_y_pre   (R, D) float32

    Perf note: keep D a multiple of 128 (lane-dense) — otherwise every
    per-timestep output store is a masked partial store.
    """
    T, R, D = inp_seq.shape
    vmem_bytes, num_tc = _tpu_info()
    budget = _vmem_budget(vmem_bytes)
    vmem_limit = int(min(vmem_bytes - 8 * 1024 * 1024,
                         budget + 16 * 1024 * 1024))
    # Single-buffer the state specs only on small-VMEM (v7x-class) parts.
    single_buf = vmem_bytes < 96 * 1024 * 1024

    def run(single):
        tile = tm if tm is not None else _choose_tm(
            R, D, inp_seq.dtype.itemsize,
            vmem_bytes=vmem_bytes, num_tc=num_tc, single_buffer_state=single)
        return _spiking_ln_call(
            x_state, y_pre, inp_seq, weight, bias,
            tm=int(tile), single_buffer_state=bool(single),
            vmem_limit_bytes=vmem_limit)

    if not single_buf:
        return run(False)
    try:
        return run(True)
    except Exception:
        # pl.Buffered(1) not accepted on this jax build -> default buffering.
        return run(False)


def reference(x0, y0, inp_seq, weight, bias):
    """Pure-JAX reference: T sequential calls of the PyTorch module."""
    x, y_prev = x0, y0
    outs = []
    for t in range(inp_seq.shape[0]):
        x = x + inp_seq[t]
        mean = jnp.mean(x, axis=-1, keepdims=True)
        var = jnp.mean((x - mean) ** 2, axis=-1, keepdims=True)
        y = (x - mean) / jnp.sqrt(var + EPS) * weight + bias
        outs.append(y - y_prev)
        y_prev = y
    return jnp.stack(outs), x, y_prev


if __name__ == "__main__":
    # Small shapes: batch=2, seq=8, hidden dim=128 (lane-dense), T=4 timesteps.
    B, S, D, T = 2, 8, 128, 4
    R = B * S

    key = jax.random.PRNGKey(0)
    inp = jax.random.normal(key, (T, B, S, D), dtype=jnp.float32)
    inp_seq = inp.reshape(T, R, D)

    # nn.LayerNorm(dim) default parameters: weight=1, bias=0.
    weight = jnp.ones((D,), dtype=jnp.float32)
    bias = jnp.zeros((D,), dtype=jnp.float32)

    # State after reset(): X = 0, Y_pre = 0.
    x_state = jnp.zeros((R, D), dtype=jnp.float32)
    y_pre = jnp.zeros((R, D), dtype=jnp.float32)

    out_seq, x_new, y_new = spiking_layernorm_forward(
        x_state, y_pre, inp_seq, weight, bias)
    out_seq = jax.block_until_ready(out_seq)

    ref_out, ref_x, ref_y = reference(
        jnp.zeros((R, D), jnp.float32), jnp.zeros((R, D), jnp.float32),
        inp_seq, weight, bias)

    ok = (jnp.allclose(out_seq, ref_out, atol=1e-5, rtol=1e-5)
          and jnp.allclose(x_new, ref_x, atol=1e-5, rtol=1e-5)
          and jnp.allclose(y_new, ref_y, atol=1e-5, rtol=1e-5))

    # Per-timestep outputs map back to the module's (B, S, D) shape:
    _ = out_seq.reshape(T, B, S, D)

    if ok:
        print("KERNEL_OK")
    else:
        raise SystemExit("mismatch vs reference")
</pallas_src>

<mosaic_0001>
module attributes {stable_mosaic.version = 11 : i64} {
  func.func @_spiking_ln_kernel(%arg0: i32, %arg1: i32, %arg2: memref<16x128xf32, #tpu.memory_space<vmem>>, %arg3: memref<16x128xf32, #tpu.memory_space<vmem>>, %arg4: memref<1x16x128xf32, #tpu.memory_space<vmem>>, %arg5: memref<1x128xf32, #tpu.memory_space<vmem>>, %arg6: memref<1x128xf32, #tpu.memory_space<vmem>>, %arg7: memref<1x16x128xf32, #tpu.memory_space<vmem>>, %arg8: memref<16x128xf32, #tpu.memory_space<vmem>>, %arg9: memref<16x128xf32, #tpu.memory_space<vmem>>) attributes {dimension_semantics = [#tpu.dimension_semantics<parallel>, #tpu.dimension_semantics<arbitrary>], iteration_bounds = array<i64: 1, 4>, scalar_prefetch = 0 : i64, scratch_operands = 0 : i64, tpu.core_type = #tpu.core_type<tc>, window_params = [{transform_indices = @transform_0, window_bounds = array<i64: 16, 128>}, {transform_indices = @transform_1, window_bounds = array<i64: 16, 128>}, {transform_indices = @transform_2, window_bounds = array<i64: 1, 16, 128>}, {pipeline_mode = #tpu.pipeline_mode<synchronous>, transform_indices = @transform_3, window_bounds = array<i64: 1, 128>}, {pipeline_mode = #tpu.pipeline_mode<synchronous>, transform_indices = @transform_4, window_bounds = array<i64: 1, 128>}, {transform_indices = @transform_5, window_bounds = array<i64: 1, 16, 128>}, {transform_indices = @transform_6, window_bounds = array<i64: 16, 128>}, {transform_indices = @transform_7, window_bounds = array<i64: 16, 128>}]} {
    %c0_i32 = arith.constant 0 : i32
    %0 = arith.cmpi eq, %arg1, %c0_i32 : i32
    %1 = arith.extui %0 : i1 to i32
    %c0_i32_0 = arith.constant 0 : i32
    %2 = arith.cmpi ne, %1, %c0_i32_0 : i32
    scf.if %2 {
      %c0_22 = arith.constant 0 : index
      %c0_23 = arith.constant 0 : index
      %36 = vector.load %arg2[%c0_22, %c0_23] : memref<16x128xf32, #tpu.memory_space<vmem>>, vector<16x128xf32>
      %c0_24 = arith.constant 0 : index
      %c0_25 = arith.constant 0 : index
      %37 = vector.load %arg8[%c0_24, %c0_25] : memref<16x128xf32, #tpu.memory_space<vmem>>, vector<16x128xf32>
      tpu.vector_store %arg8[%c0_24, %c0_25], %36 {strides = array<i32>} : memref<16x128xf32, #tpu.memory_space<vmem>>, vector<16x128xf32>,
      %c0_26 = arith.constant 0 : index
      %c0_27 = arith.constant 0 : index
      %38 = vector.load %arg3[%c0_26, %c0_27] : memref<16x128xf32, #tpu.memory_space<vmem>>, vector<16x128xf32>
      %c0_28 = arith.constant 0 : index
      %c0_29 = arith.constant 0 : index
      %39 = vector.load %arg9[%c0_28, %c0_29] : memref<16x128xf32, #tpu.memory_space<vmem>>, vector<16x128xf32>
      tpu.vector_store %arg9[%c0_28, %c0_29], %38 {strides = array<i32>} : memref<16x128xf32, #tpu.memory_space<vmem>>, vector<16x128xf32>,
    } else {
    }
    %c0 = arith.constant 0 : index
    %c0_1 = arith.constant 0 : index
    %3 = vector.load %arg8[%c0, %c0_1] : memref<16x128xf32, #tpu.memory_space<vmem>>, vector<16x128xf32>
    %c0_2 = arith.constant 0 : index
    %c0_3 = arith.constant 0 : index
    %c0_4 = arith.constant 0 : index
    %4 = vector.load %arg4[%c0_2, %c0_3, %c0_4] : memref<1x16x128xf32, #tpu.memory_space<vmem>>, vector<1x16x128xf32>
    %5 = vector.shape_cast %4 : vector<1x16x128xf32> to vector<16x128xf32>
    %6 = arith.addf %3, %5 : vector<16x128xf32>
    %cst = arith.constant dense<0.000000e+00> : vector<16xf32>
    %7 = vector.multi_reduction <add>, %6, %cst [1] : vector<16x128xf32> to vector<16xf32>
    %8 = vector.shape_cast %7 : vector<16xf32> to vector<16x1xf32>
    %cst_5 = arith.constant 1.280000e+02 : f32
    %9 = vector.broadcast %cst_5 : f32 to vector<16x1xf32>
    %10 = arith.divf %8, %9 : vector<16x1xf32>
    %11 = vector.broadcast %10 : vector<16x1xf32> to vector<16x128xf32>
    %12 = arith.subf %6, %11 : vector<16x128xf32>
    %13 = arith.mulf %12, %12 : vector<16x128xf32>
    %cst_6 = arith.constant dense<0.000000e+00> : vector<16xf32>
    %14 = vector.multi_reduction <add>, %13, %cst_6 [1] : vector<16x128xf32> to vector<16xf32>
    %15 = vector.shape_cast %14 : vector<16xf32> to vector<16x1xf32>
    %cst_7 = arith.constant 1.280000e+02 : f32
    %16 = vector.broadcast %cst_7 : f32 to vector<16x1xf32>
    %17 = arith.divf %15, %16 : vector<16x1xf32>
    %cst_8 = arith.constant 9.99999974E-6 : f32
    %18 = vector.broadcast %cst_8 : f32 to vector<16x1xf32>
    %19 = arith.addf %17, %18 : vector<16x1xf32>
    %20 = math.rsqrt %19 : vector<16x1xf32>
    %21 = vector.broadcast %20 : vector<16x1xf32> to vector<16x128xf32>
    %22 = arith.mulf %12, %21 : vector<16x128xf32>
    %c0_9 = arith.constant 0 : index
    %c0_10 = arith.constant 0 : index
    %23 = vector.load %arg5[%c0_9, %c0_10] : memref<1x128xf32, #tpu.memory_space<vmem>>, vector<1x128xf32>
    %24 = vector.broadcast %23 : vector<1x128xf32> to vector<16x128xf32>
    %25 = arith.mulf %22, %24 : vector<16x128xf32>
    %c0_11 = arith.constant 0 : index
    %c0_12 = arith.constant 0 : index
    %26 = vector.load %arg6[%c0_11, %c0_12] : memref<1x128xf32, #tpu.memory_space<vmem>>, vector<1x128xf32>
    %27 = vector.broadcast %26 : vector<1x128xf32> to vector<16x128xf32>
    %28 = arith.addf %25, %27 : vector<16x128xf32>
    %c0_13 = arith.constant 0 : index
    %c0_14 = arith.constant 0 : index
    %29 = vector.load %arg9[%c0_13, %c0_14] : memref<16x128xf32, #tpu.memory_space<vmem>>, vector<16x128xf32>
    %30 = arith.subf %28, %29 : vector<16x128xf32>
    %c0_15 = arith.constant 0 : index
    %c0_16 = arith.constant 0 : index
    %c0_17 = arith.constant 0 : index
    %31 = vector.load %arg7[%c0_15, %c0_16, %c0_17] : memref<1x16x128xf32, #tpu.memory_space<vmem>>, vector<1x16x128xf32>
    %32 = vector.shape_cast %31 : vector<1x16x128xf32> to vector<16x128xf32>
    %33 = vector.shape_cast %30 : vector<16x128xf32> to vector<1x16x128xf32>
    tpu.vector_store %arg7[%c0_15, %c0_16, %c0_17], %33 {strides = array<i32>} : memref<1x16x128xf32, #tpu.memory_space<vmem>>, vector<1x16x128xf32>,
    %c0_18 = arith.constant 0 : index
    %c0_19 = arith.constant 0 : index
    %34 = vector.load %arg8[%c0_18, %c0_19] : memref<16x128xf32, #tpu.memory_space<vmem>>, vector<16x128xf32>
    tpu.vector_store %arg8[%c0_18, %c0_19], %6 {strides = array<i32>} : memref<16x128xf32, #tpu.memory_space<vmem>>, vector<16x128xf32>,
    %c0_20 = arith.constant 0 : index
    %c0_21 = arith.constant 0 : index
    %35 = vector.load %arg9[%c0_20, %c0_21] : memref<16x128xf32, #tpu.memory_space<vmem>>, vector<16x128xf32>
    tpu.vector_store %arg9[%c0_20, %c0_21], %28 {strides = array<i32>} : memref<16x128xf32, #tpu.memory_space<vmem>>, vector<16x128xf32>,
    return
  }
  func.func @transform_0(%arg0: i32, %arg1: i32) -> (i32, i32) {
    %c0_i32 = arith.constant 0 : i32
    %c0_i32_0 = arith.constant 0 : i32
    return %arg0, %c0_i32 : i32, i32
  }
  func.func @transform_1(%arg0: i32, %arg1: i32) -> (i32, i32) {
    %c0_i32 = arith.constant 0 : i32
    %c0_i32_0 = arith.constant 0 : i32
    return %arg0, %c0_i32 : i32, i32
  }
  func.func @transform_2(%arg0: i32, %arg1: i32) -> (i32, i32, i32) {
    %c0_i32 = arith.constant 0 : i32
    %c0_i32_0 = arith.constant 0 : i32
    return %arg1, %arg0, %c0_i32 : i32, i32, i32
  }
  func.func @transform_3(%arg0: i32, %arg1: i32) -> (i32, i32) {
    %c0_i32 = arith.constant 0 : i32
    %c0_i32_0 = arith.constant 0 : i32
    %c0_i32_1 = arith.constant 0 : i32
    return %c0_i32, %c0_i32_0 : i32, i32
  }
  func.func @transform_4(%arg0: i32, %arg1: i32) -> (i32, i32) {
    %c0_i32 = arith.constant 0 : i32
    %c0_i32_0 = arith.constant 0 : i32
    %c0_i32_1 = arith.constant 0 : i32
    return %c0_i32, %c0_i32_0 : i32, i32
  }
  func.func @transform_5(%arg0: i32, %arg1: i32) -> (i32, i32, i32) {
    %c0_i32 = arith.constant 0 : i32
    %c0_i32_0 = arith.constant 0 : i32
    return %arg1, %arg0, %c0_i32 : i32, i32, i32
  }
  func.func @transform_6(%arg0: i32, %arg1: i32) -> (i32, i32) {
    %c0_i32 = arith.constant 0 : i32
    %c0_i32_0 = arith.constant 0 : i32
    return %arg0, %c0_i32 : i32, i32
  }
  func.func @transform_7(%arg0: i32, %arg1: i32) -> (i32, i32) {
    %c0_i32 = arith.constant 0 : i32
    %c0_i32_0 = arith.constant 0 : i32
    return %arg0, %c0_i32 : i32, i32
  }
}

</mosaic_0001>

<llo_original>
// kernel: _spiking_ln_call.1
$region0: #{_spiking_ln_call.1}
  #allocation0 [shape = 'u32[]', space=smem, size = 0x4, offset = 0x4, fixed_abs, tag = 'smem constant byte address 0x4 - core index']
  #allocation1 [shape = 'u32[144,128]{1,0:T(1,128)}', space=vmem, size = 0x12000, scoped, tag = 'internal scratch']
  %s0 = inlined_call_operand.hbm [shape: f32[16,128], index: 0, kind: input, shape index: {}, may-alias: {0,6}]
  %s1 = inlined_call_operand.hbm [shape: f32[16,128], index: 1, kind: input, shape index: {}, may-alias: {1,7}]
  %s2 = inlined_call_operand.hbm [shape: f32[4,16,128], index: 2, kind: input, shape index: {}]
  %s3 = inlined_call_operand.hbm [shape: f32[1,128], index: 3, kind: input, shape index: {}]
  %s4 = inlined_call_operand.hbm [shape: f32[1,128], index: 4, kind: input, shape index: {}]
  %s5 = inlined_call_operand.hbm [shape: f32[4,16,128], index: 5, kind: output, shape index: {0}]
  %s6 = inlined_call_operand.hbm [shape: f32[16,128], index: 6, kind: output, shape index: {1}, may-alias: {0,6}]
  %s7 = inlined_call_operand.hbm [shape: f32[16,128], index: 7, kind: output, shape index: {2}, may-alias: {1,7}]
  %8 = xla_tuple %s5, %s6, %s7
  %s9 = sld [smem:[#allocation0]]
  $region93: #{_spiking_ln_call.1} parent=0
    _
  %s11 = ssub.s32 1, %s9
  %s12 = scalar_select 0, %s11, %s9
  $region1: #{_spiking_ln_call.1} parent=0
    #allocation2 [shape = 'u8[8192]{0}', space=vmem, size = 0x2000, scoped, tag = 'input window, operand 0, single buffered']
    #allocation3 [shape = 's32[2]{0}', space=sflag, size = 0x8, scoped, tag = 'scoped memory for _spiking_ln_call.1']
    #allocation4 [shape = 's32[2]{0}', space=sflag, size = 0x8, scoped, tag = 'scoped memory for _spiking_ln_call.1']
    #allocation5 [shape = 'u8[8192]{0}', space=vmem, size = 0x2000, scoped, tag = 'input window, operand 1, single buffered']
    #allocation6 [shape = 's32[1]{0}', space=sflag, size = 0x4, scoped, tag = 'scoped memory for _spiking_ln_call.1']
    #allocation7 [shape = 'u8[16384]{0}', space=vmem, size = 0x4000, scoped, tag = 'input window, operand 2']
    #allocation8 [shape = 'u8[512]{0}', space=vmem, size = 0x400, scoped, tag = 'input window, operand 3, single buffered']
    #allocation9 [shape = 'u8[512]{0}', space=vmem, size = 0x400, scoped, tag = 'input window, operand 4, single buffered']
    #allocation10 [shape = 's32[1]{0}', space=sflag, size = 0x4, scoped, tag = 'scoped memory for _spiking_ln_call.1']
    #allocation11 [shape = 'u8[16384]{0}', space=vmem, size = 0x4000, scoped, tag = 'output window, operand 0']
    #allocation12 [shape = 'u8[8192]{0}', space=vmem, size = 0x2000, scoped, tag = 'output window, operand 1, single buffered']
    #allocation13 [shape = 's32[1]{0}', space=sflag, size = 0x4, scoped, tag = 'scoped memory for _spiking_ln_call.1']
    #allocation14 [shape = 'u8[8192]{0}', space=vmem, size = 0x2000, scoped, tag = 'output window, operand 2, single buffered']
    %13 = vsyncpa [#allocation3], 0
    %14 = vsyncpa [#allocation6], 0
    %15 = vsyncpa [#allocation10], 0
    %16 = vsyncpa [#allocation4], 0
    %s17 = scalar_lea.sflag [#allocation4], 1
    %18 = vsyncpa %s17, 0
    %19 = vsyncpa [#allocation13], 0
    loop: start=0, step=1, limit=6
    $region2: #{_spiking_ln_call.1} parent=1 // loop_pre_header
      _
    $region3: #{_spiking_ln_call.1} parent=1 // loop_header
      %s21 = sphi 0, %s25
      %p22 = scmp.ge.s32.totalorder %s21, 6
      %s28 = sphi 0, %s40
      %s29 = sphi 0, %s36
      %s30 = sphi 0, %s28
      %s31 = sphi 0, %s29
      %s32 = sphi 0, %s30
      %s33 = sphi 0, %s31
      %s43 = sphi 0, %s45
      %s46 = sphi 0, %s43
      %s47 = sphi 0, %s46
      %s63 = sphi 0, %s47
      %s69 = sphi 0, %s71
      %s72 = sphi 0, %s69
      %s73 = sphi 0, %s72
      %s89 = sphi 0, %s73
      %s97 = sphi 0, %s99
      %s100 = sphi 0, %s97
      %s101 = sphi 0, %s100
      %s117 = sphi 0, %s101
      %s121 = sphi 0, %s121
      %s123 = sphi 0, %s121
      %s124 = sphi 0, %s123
      %s138 = sphi 0, %s124
      %s142 = sphi 0, %s142
      %s144 = sphi 0, %s142
      %s145 = sphi 0, %s144
      %s159 = sphi 0, %s145
      %s167 = sphi 0, %s169
      %s170 = sphi 0, %s167
      %s171 = sphi 0, %s170
      %s187 = sphi 0, %s171
      %s193 = sphi 0, %s195
      %s196 = sphi 0, %s193
      %s197 = sphi 0, %s196
      %s213 = sphi 0, %s197
      %s219 = sphi 0, %s221
      %s222 = sphi 0, %s219
      %s223 = sphi 0, %s222
      %s239 = sphi 0, %s223
    $region4: #{_spiking_ln_call.1} parent=1 // loop_header_branch
      %24 = sbr.rel (%p22) target = $region8
    $region5: #{_spiking_ln_call.1} parent=1 // loop_body
      %s26 = ssub.s32 %s21, 1
      %s27 = ssub.s32 %s21, 2
      %s34 = sadd.s32 1, %s29
      %p35 = scmp.ge.s32.totalorder %s34, 4
      %s36 = scalar_select %p35, 0, %s34
      %s37 = sadd.s32 1, %s28
      %s38 = scalar_select %p35, %s37, %s28
      %p39 = scmp.ge.s32.totalorder %s38, 1
      %s40 = scalar_select %p39, 0, %s38
      %s41 = ssub.s32 %s28, %s40
      %p42 = scmp.eq.s32.totalorder %s41, 0
      %s44 = sadd.s32 %s43, 1
      %s45 = scalar_select %p42, %s43, %s44
      %p48 = pneg %p42
      %p49 = scmp.eq.s32.totalorder %s21, 3
      %p50 = por %p48, %p49
      %p51 = scmp.ne.s32.totalorder %s43, %s46
      %p52 = scmp.eq.s32.totalorder %s21, 0
      %p53 = por %p51, %p52
      %p54 = scmp.ne.s32.totalorder %s43, %s46
      %p55 = scmp.eq.s32.totalorder %s26, 3
      %p56 = por %p54, %p55
      %p57 = scmp.ne.s32.totalorder %s46, %s47
      %p58 = scmp.eq.s32.totalorder %s26, 0
      %p59 = por %p57, %p58
      %p60 = scmp.ne.s32.totalorder %s46, %s47
      %p61 = scmp.eq.s32.totalorder %s27, 3
      %p62 = por %p60, %p61
      %p64 = scmp.ne.s32.totalorder %s47, %s63
      %p65 = scmp.eq.s32.totalorder %s27, 0
      %p66 = por %p64, %p65
      %s67 = ssub.s32 %s28, %s40
      %p68 = scmp.eq.s32.totalorder %s67, 0
      %s70 = sadd.s32 %s69, 1
      %s71 = scalar_select %p68, %s69, %s70
      %p74 = pneg %p68
      %p75 = scmp.eq.s32.totalorder %s21, 3
      %p76 = por %p74, %p75
      %p77 = scmp.ne.s32.totalorder %s69, %s72
      %p78 = scmp.eq.s32.totalorder %s21, 0
      %p79 = por %p77, %p78
      %p80 = scmp.ne.s32.totalorder %s69, %s72
      %p81 = scmp.eq.s32.totalorder %s26, 3
      %p82 = por %p80, %p81
      %p83 = scmp.ne.s32.totalorder %s72, %s73
      %p84 = scmp.eq.s32.totalorder %s26, 0
      %p85 = por %p83, %p84
      %p86 = scmp.ne.s32.totalorder %s72, %s73
      %p87 = scmp.eq.s32.totalorder %s27, 3
      %p88 = por %p86, %p87
      %p90 = scmp.ne.s32.totalorder %s73, %s89
      %p91 = scmp.eq.s32.totalorder %s27, 0
      %p92 = por %p90, %p91
      %s93 = ssub.s32 %s29, %s36
      %s94 = ssub.s32 %s28, %s40
      %s95 = sor.u32 %s93, %s94
      %p96 = scmp.eq.s32.totalorder %s95, 0
      %s98 = sadd.s32 %s97, 1
      %s99 = scalar_select %p96, %s97, %s98
      %p102 = pneg %p96
      %p103 = scmp.eq.s32.totalorder %s21, 3
      %p104 = por %p102, %p103
      %p105 = scmp.ne.s32.totalorder %s97, %s100
      %p106 = scmp.eq.s32.totalorder %s21, 0
      %p107 = por %p105, %p106
      %p108 = scmp.ne.s32.totalorder %s97, %s100
      %p109 = scmp.eq.s32.totalorder %s26, 3
      %p110 = por %p108, %p109
      %p111 = scmp.ne.s32.totalorder %s100, %s101
      %p112 = scmp.eq.s32.totalorder %s26, 0
      %p113 = por %p111, %p112
      %p114 = scmp.ne.s32.totalorder %s100, %s101
      %p115 = scmp.eq.s32.totalorder %s27, 3
      %p116 = por %p114, %p115
      %p118 = scmp.ne.s32.totalorder %s101, %s117
      %p119 = scmp.eq.s32.totalorder %s27, 0
      %p120 = por %p118, %p119
      %s122 = sadd.s32 %s121, 1
      %p125 = scmp.eq.s32.totalorder %s21, 3
      %p126 = scmp.ne.s32.totalorder %s121, %s123
      %p127 = scmp.eq.s32.totalorder %s21, 0
      %p128 = por %p126, %p127
      %p129 = scmp.ne.s32.totalorder %s121, %s123
      %p130 = scmp.eq.s32.totalorder %s26, 3
      %p131 = por %p129, %p130
      %p132 = scmp.ne.s32.totalorder %s123, %s124
      %p133 = scmp.eq.s32.totalorder %s26, 0
      %p134 = por %p132, %p133
      %p135 = scmp.ne.s32.totalorder %s123, %s124
      %p136 = scmp.eq.s32.totalorder %s27, 3
      %p137 = por %p135, %p136
      %p139 = scmp.ne.s32.totalorder %s124, %s138
      %p140 = scmp.eq.s32.totalorder %s27, 0
      %p141 = por %p139, %p140
      %s143 = sadd.s32 %s142, 1
      %p146 = scmp.eq.s32.totalorder %s21, 3
      %p147 = scmp.ne.s32.totalorder %s142, %s144
      %p148 = scmp.eq.s32.totalorder %s21, 0
      %p149 = por %p147, %p148
      %p150 = scmp.ne.s32.totalorder %s142, %s144
      %p151 = scmp.eq.s32.totalorder %s26, 3
      %p152 = por %p150, %p151
      %p153 = scmp.ne.s32.totalorder %s144, %s145
      %p154 = scmp.eq.s32.totalorder %s26, 0
      %p155 = por %p153, %p154
      %p156 = scmp.ne.s32.totalorder %s144, %s145
      %p157 = scmp.eq.s32.totalorder %s27, 3
      %p158 = por %p156, %p157
      %p160 = scmp.ne.s32.totalorder %s145, %s159
      %p161 = scmp.eq.s32.totalorder %s27, 0
      %p162 = por %p160, %p161
      %s163 = ssub.s32 %s29, %s36
      %s164 = ssub.s32 %s28, %s40
      %s165 = sor.u32 %s163, %s164
      %p166 = scmp.eq.s32.totalorder %s165, 0
      %s168 = sadd.s32 %s167, 1
      %s169 = scalar_select %p166, %s167, %s168
      %p172 = pneg %p166
      %p173 = scmp.eq.s32.totalorder %s21, 3
      %p174 = por %p172, %p173
      %p175 = scmp.ne.s32.totalorder %s167, %s170
      %p176 = scmp.eq.s32.totalorder %s21, 0
      %p177 = por %p175, %p176
      %p178 = scmp.ne.s32.totalorder %s167, %s170
      %p179 = scmp.eq.s32.totalorder %s26, 3
      %p180 = por %p178, %p179
      %p181 = scmp.ne.s32.totalorder %s170, %s171
      %p182 = scmp.eq.s32.totalorder %s26, 0
      %p183 = por %p181, %p182
      %p184 = scmp.ne.s32.totalorder %s170, %s171
      %p185 = scmp.eq.s32.totalorder %s27, 3
      %p186 = por %p184, %p185
      %p188 = scmp.ne.s32.totalorder %s171, %s187
      %p189 = scmp.eq.s32.totalorder %s27, 0
      %p190 = por %p188, %p189
      %s191 = ssub.s32 %s28, %s40
      %p192 = scmp.eq.s32.totalorder %s191, 0
      %s194 = sadd.s32 %s193, 1
      %s195 = scalar_select %p192, %s193, %s194
      %p198 = pneg %p192
      %p199 = scmp.eq.s32.totalorder %s21, 3
      %p200 = por %p198, %p199
      %p201 = scmp.ne.s32.totalorder %s193, %s196
      %p202 = scmp.eq.s32.totalorder %s21, 0
      %p203 = por %p201, %p202
      %p204 = scmp.ne.s32.totalorder %s193, %s196
      %p205 = scmp.eq.s32.totalorder %s26, 3
      %p206 = por %p204, %p205
      %p207 = scmp.ne.s32.totalorder %s196, %s197
      %p208 = scmp.eq.s32.totalorder %s26, 0
      %p209 = por %p207, %p208
      %p210 = scmp.ne.s32.totalorder %s196, %s197
      %p211 = scmp.eq.s32.totalorder %s27, 3
      %p212 = por %p210, %p211
      %p214 = scmp.ne.s32.totalorder %s197, %s213
      %p215 = scmp.eq.s32.totalorder %s27, 0
      %p216 = por %p214, %p215
      %s217 = ssub.s32 %s28, %s40
      %p218 = scmp.eq.s32.totalorder %s217, 0
      %s220 = sadd.s32 %s219, 1
      %s221 = scalar_select %p218, %s219, %s220
      %p224 = pneg %p218
      %p225 = scmp.eq.s32.totalorder %s21, 3
      %p226 = por %p224, %p225
      %p227 = scmp.ne.s32.totalorder %s219, %s222
      %p228 = scmp.eq.s32.totalorder %s21, 0
      %p229 = por %p227, %p228
      %p230 = scmp.ne.s32.totalorder %s219, %s222
      %p231 = scmp.eq.s32.totalorder %s26, 3
      %p232 = por %p230, %p231
      %p233 = scmp.ne.s32.totalorder %s222, %s223
      %p234 = scmp.eq.s32.totalorder %s26, 0
      %p235 = por %p233, %p234
      %p236 = scmp.ne.s32.totalorder %s222, %s223
      %p237 = scmp.eq.s32.totalorder %s27, 3
      %p238 = por %p236, %p237
      %p240 = scmp.ne.s32.totalorder %s223, %s239
      %p241 = scmp.eq.s32.totalorder %s27, 0
      %p242 = por %p240, %p241
      %p243 = scmp.le.s32.totalorder 1, %s21
      %p244 = scmp.lt.s32.totalorder %s21, 5
      %p245 = pnand %p243, %p244
      %p246 = pneg %p245
      // Predicated region
      $region9: #{_spiking_ln_call.1} parent=5 // pred_check
        _
      $region10: #{_spiking_ln_call.1} parent=5 // pred_check_branch
        %248 = sbr.rel (%p245) target = $region12
      $region11: #{_spiking_ln_call.1} parent=5 // pred_region
        %s249 = ssub.s32 %s21, 1
        // Predicated region
        $region13: #{_spiking_ln_call.1} parent=11 // pred_check
          %p250 = pneg %p59
        $region14: #{_spiking_ln_call.1} parent=11 // pred_check_branch
          %252 = sbr.rel (%p250) target = $region16
        $region15: #{_spiking_ln_call.1} parent=11 // pred_region
          %s253 = smul.u32 2, %s30
          %s255 = ssub.s32 256, 256
          %256 = vsyncadd [#allocation3], %s255
          %s257 = smul.addr %s253, 128
          %s258 = scalar_lea.hbm %s0, %s257
          %s259 = sshll.u32 [#allocation2], 4
          %s260 = int_to_ptr.vmem [resolvable:$true] %s259
          %265 = dma.hbm_to_vmem [thread:$0]  %s258, 256, %s260, [#allocation3], 128, 128, 8
        $region16: #{_spiking_ln_call.1} parent=11 // pred_fallthru
          _
        // Predicated region
        $region17: #{_spiking_ln_call.1} parent=11 // pred_check
          %p266 = pneg %p85
        $region18: #{_spiking_ln_call.1} parent=11 // pred_check_branch
          %268 = sbr.rel (%p266) target = $region20
        $region19: #{_spiking_ln_call.1} parent=11 // pred_region
          %s269 = smul.u32 2, %s30
          %s271 = ssub.s32 256, 256
          %272 = vsyncadd [#allocation6], %s271
          %s273 = smul.addr %s269, 128
          %s274 = scalar_lea.hbm %s1, %s273
          %s275 = sshll.u32 [#allocation5], 4
          %s276 = int_to_ptr.vmem [resolvable:$true] %s275
          %281 = dma.hbm_to_vmem [thread:$0]  %s274, 256, %s276, [#allocation6], 128, 128, 8
        $region20: #{_spiking_ln_call.1} parent=11 // pred_fallthru
          _
        // Predicated region
        $region21: #{_spiking_ln_call.1} parent=11 // pred_check
          %p282 = pneg %p134
        $region22: #{_spiking_ln_call.1} parent=11 // pred_check_branch
          %284 = sbr.rel (%p282) target = $region24
        $region23: #{_spiking_ln_call.1} parent=11 // pred_region
          %s286 = ssub.s32 16, 16
          %287 = vsyncadd [#allocation6], %s286
          %s289 = sshll.u32 [#allocation8], 4
          %s290 = int_to_ptr.vmem [resolvable:$true] %s289
          %292 = dma.hbm_to_vmem [thread:$0]  %s3, 16, %s290, [#allocation6]
        $region24: #{_spiking_ln_call.1} parent=11 // pred_fallthru
          _
        // Predicated region
        $region25: #{_spiking_ln_call.1} parent=11 // pred_check
          %p293 = pneg %p155
        $region26: #{_spiking_ln_call.1} parent=11 // pred_check_branch
          %295 = sbr.rel (%p293) target = $region28
        $region27: #{_spiking_ln_call.1} parent=11 // pred_region
          %s297 = ssub.s32 16, 16
          %298 = vsyncadd [#allocation10], %s297
          %s300 = sshll.u32 [#allocation9], 4
          %s301 = int_to_ptr.vmem [resolvable:$true] %s300
          %303 = dma.hbm_to_vmem [thread:$0]  %s4, 16, %s301, [#allocation10]
        $region28: #{_spiking_ln_call.1} parent=11 // pred_fallthru
          _
      $region12: #{_spiking_ln_call.1} parent=5 // pred_fallthru
        _
      %p304 = scmp.lt.s32.totalorder %s21, 4
      // Predicated region
      $region29: #{_spiking_ln_call.1} parent=5 // pred_check
        %p305 = pneg %p304
      $region30: #{_spiking_ln_call.1} parent=5 // pred_check_branch
        %307 = sbr.rel (%p305) target = $region32
      $region31: #{_spiking_ln_call.1} parent=5 // pred_region
        // Predicated region
        $region33: #{_spiking_ln_call.1} parent=31 // pred_check
          %p308 = pneg %p107
        $region34: #{_spiking_ln_call.1} parent=31 // pred_check_branch
          %310 = sbr.rel (%p308) target = $region36
        $region35: #{_spiking_ln_call.1} parent=31 // pred_region
          %s311 = sand.u32 %s21, 1
          %s312 = scalar_lea.sflag [#allocation3], %s311
          %s313 = sand.u32 %s97, 1
          %s314 = smul.addr %s313, 16
          %s315 = scalar_lea.vmem [#allocation7], %s314
          %s316 = smul.u32 2, %s28
          %s318 = ssub.s32 256, 256
          %319 = vsyncadd %s312, %s318
          %s320 = smul.addr %s29, 2
          %s321 = sadd.s32 %s316, %s320
          %s322 = smul.addr %s321, 128
          %s323 = scalar_lea.hbm %s2, %s322
          %s324 = sshll.u32 %s315, 4
          %s325 = int_to_ptr.vmem [resolvable:$true] %s324
          %330 = dma.hbm_to_vmem [thread:$0]  %s323, 256, %s325, %s312, 128, 128, 8
        $region36: #{_spiking_ln_call.1} parent=31 // pred_fallthru
          _
      $region32: #{_spiking_ln_call.1} parent=5 // pred_fallthru
        _
      %p331 = scmp.le.s32.totalorder 1, %s21
      %p332 = scmp.lt.s32.totalorder %s21, 5
      %p333 = pnand %p331, %p332
      %p334 = pneg %p333
      // Predicated region
      $region37: #{_spiking_ln_call.1} parent=5 // pred_check
        _
      $region38: #{_spiking_ln_call.1} parent=5 // pred_check_branch
        %336 = sbr.rel (%p333) target = $region40
      $region39: #{_spiking_ln_call.1} parent=5 // pred_region
        %s337 = ssub.s32 %s21, 1
        // Predicated region
        $region41: #{_spiking_ln_call.1} parent=39 // pred_check
          %p338 = pneg %p59
        $region42: #{_spiking_ln_call.1} parent=39 // pred_check_branch
          %340 = sbr.rel (%p338) target = $region44
        $region43: #{_spiking_ln_call.1} parent=39 // pred_region
          %341 = dma.done [#allocation3], 256
        $region44: #{_spiking_ln_call.1} parent=39 // pred_fallthru
          _
        // Predicated region
        $region45: #{_spiking_ln_call.1} parent=39 // pred_check
          %p342 = pneg %p85
        $region46: #{_spiking_ln_call.1} parent=39 // pred_check_branch
          %344 = sbr.rel (%p342) target = $region48
        $region47: #{_spiking_ln_call.1} parent=39 // pred_region
          %345 = dma.done [#allocation6], 256
        $region48: #{_spiking_ln_call.1} parent=39 // pred_fallthru
          _
        %s346 = sand.u32 %s26, 1
        %s347 = scalar_lea.sflag [#allocation3], %s346
        %s348 = sand.u32 %s100, 1
        %s349 = smul.addr %s348, 16
        %s350 = scalar_lea.vmem [#allocation7], %s349
        // Predicated region
        $region49: #{_spiking_ln_call.1} parent=39 // pred_check
          %p351 = pneg %p113
        $region50: #{_spiking_ln_call.1} parent=39 // pred_check_branch
          %353 = sbr.rel (%p351) target = $region52
        $region51: #{_spiking_ln_call.1} parent=39 // pred_region
          %354 = dma.done %s347, 256
        $region52: #{_spiking_ln_call.1} parent=39 // pred_fallthru
          _
        // Predicated region
        $region53: #{_spiking_ln_call.1} parent=39 // pred_check
          %p355 = pneg %p134
        $region54: #{_spiking_ln_call.1} parent=39 // pred_check_branch
          %357 = sbr.rel (%p355) target = $region56
        $region55: #{_spiking_ln_call.1} parent=39 // pred_region
          %358 = dma.done [#allocation6], 16
        $region56: #{_spiking_ln_call.1} parent=39 // pred_fallthru
          _
        // Predicated region
        $region57: #{_spiking_ln_call.1} parent=39 // pred_check
          %p359 = pneg %p155
        $region58: #{_spiking_ln_call.1} parent=39 // pred_check_branch
          %361 = sbr.rel (%p359) target = $region60
        $region59: #{_spiking_ln_call.1} parent=39 // pred_region
          %362 = dma.done [#allocation10], 16
        $region60: #{_spiking_ln_call.1} parent=39 // pred_fallthru
          _
        %p363 = pneg %p59
        %p364 = pneg %p56
        %p365 = pneg %p85
        %p366 = pneg %p82
        %s367 = sand.u32 %s26, 1
        %s368 = scalar_lea.sflag [#allocation3], %s367
        %s369 = sand.u32 %s100, 1
        %s370 = smul.addr %s369, 16
        %s371 = scalar_lea.vmem [#allocation7], %s370
        %p372 = pneg %p113
        %p373 = pneg %p110
        %p374 = pneg %p134
        %p375 = pneg %p131
        %p376 = pneg %p155
        %p377 = pneg %p152
        %p378 = pneg %p183
        %p379 = pneg %p180
        %s380 = sand.u32 %s170, 1
        %s381 = scalar_lea.sflag [#allocation4], %s380
        %s382 = sand.u32 %s170, 1
        %s383 = smul.addr %s382, 16
        %s384 = scalar_lea.vmem [#allocation11], %s383
        %p385 = pneg %p209
        %p386 = pneg %p206
        %p387 = pneg %p235
        %p388 = pneg %p232
        %s389 = smul.u32 2, %s30
        %s390 = smul.u32 2, %s30
        %s391 = smul.u32 2, %s30
        %s392 = smul.u32 2, %s30
        %s393 = smul.u32 2, %s30
        %s394 = smul.u32 2, %s30
        %p395 = scmp.eq.s32.totalorder %s31, 0
        // Predicated region
        $region61: #{_spiking_ln_call.1} parent=39 // pred_check
          %p396 = pneg %p395
        $region62: #{_spiking_ln_call.1} parent=39 // pred_check_branch
          %398 = sbr.rel (%p396) target = $region64
        $region63: #{_spiking_ln_call.1} parent=39 // pred_region
          %v399 = vld [vmem:[#allocation2] sm:$0xff]
          %v400 = vld [vmem:[#allocation2 + $0x8] sm:$0xff]
          %401 = vst [vmem:[#allocation12] sm:$0xff] %v399
          %402 = vst [vmem:[#allocation12 + $0x8] sm:$0xff] %v400
          %v403 = vld [vmem:[#allocation5] sm:$0xff]
          %v404 = vld [vmem:[#allocation5 + $0x8] sm:$0xff]
          %405 = vst [vmem:[#allocation14] sm:$0xff] %v403
          %406 = vst [vmem:[#allocation14 + $0x8] sm:$0xff] %v404
        $region64: #{_spiking_ln_call.1} parent=39 // pred_fallthru
          _
        %v407 = vld [vmem:[#allocation12] sm:$0xff]
        %v408 = vld [vmem:[#allocation12 + $0x8] sm:$0xff]
        %v409 = vld [vmem:[%s350] sm:$0xff]
        %v410 = vld [vmem:[%s350 + $0x8] sm:$0xff]
        %v411 = vadd.f32 %v407, %v409
        %v412 = vadd.f32 %v408, %v410
        %413 = vadd.xlane.f32.xlu0 %v411
        %v414 = vpop.xlane.xlu0 %413
        %415 = vadd.xlane.f32.xlu0 %v412
        %v416 = vpop.xlane.xlu0 %415
        %v417 = vrcp.pop 128.0
        %v418 = vmul.f32 %v414, %v417
        %v419 = vmul.f32 %v416, %v417
        %v420 = vsub.f32 %v411, %v418
        %v421 = vsub.f32 %v412, %v419
        %v422 = vmul.f32 %v420, %v420
        %v423 = vmul.f32 %v421, %v421
        %424 = vadd.xlane.f32.xlu0 %v422
        %v425 = vpop.xlane.xlu0 %424
        %426 = vadd.xlane.f32.xlu0 %v423
        %v427 = vpop.xlane.xlu0 %426
        %v428 = vmul.f32 %v425, %v417
        %v429 = vmul.f32 %v427, %v417
        %v430 = vadd.f32 %v428, 1e-05
        %v431 = vadd.f32 %v429, 1e-05
        %v432 = vrsqrt.pop %v430
        %v433 = vrsqrt.pop %v431
        %v434 = vmul.f32 %v420, %v432
        %v435 = vmul.f32 %v421, %v433
        %v436 = vld [vmem:[#allocation8] sm:$0x1]
        %v438 = vlaneseq
        %v439 = vshrl.u32 %v438, 7
        %v440 = vsub.s32 0, %v439
        %v441 = vrot.slane %v436, %v440
        %v443 = vmul.f32 %v434, %v441
        %v444 = vmul.f32 %v435, %v441
        %v445 = vld [vmem:[#allocation9] sm:$0x1]
        %v447 = vlaneseq
        %v448 = vshrl.u32 %v447, 7
        %v449 = vsub.s32 0, %v448
        %v450 = vrot.slane %v445, %v449
        %v452 = vadd.f32 %v443, %v450
        %v453 = vadd.f32 %v444, %v450
        %v454 = vld [vmem:[#allocation14] sm:$0xff]
        %v455 = vld [vmem:[#allocation14 + $0x8] sm:$0xff]
        %v456 = vsub.f32 %v452, %v454
        %v457 = vsub.f32 %v453, %v455
        %458 = vst [vmem:[%s384] sm:$0xff] %v456
        %459 = vst [vmem:[%s384 + $0x8] sm:$0xff] %v457
        %460 = vst [vmem:[#allocation12] sm:$0xff] %v411
        %461 = vst [vmem:[#allocation12 + $0x8] sm:$0xff] %v412
        %462 = vst [vmem:[#allocation14] sm:$0xff] %v452
        %463 = vst [vmem:[#allocation14 + $0x8] sm:$0xff] %v453
        %s464 = sand.u32 %s170, 1
        %s465 = scalar_lea.sflag [#allocation4], %s464
        %s466 = sand.u32 %s170, 1
        %s467 = smul.addr %s466, 16
        %s468 = scalar_lea.vmem [#allocation11], %s467
        // Predicated region
        $region65: #{_spiking_ln_call.1} parent=39 // pred_check
          %p469 = pneg %p180
        $region66: #{_spiking_ln_call.1} parent=39 // pred_check_branch
          %471 = sbr.rel (%p469) target = $region68
        $region67: #{_spiking_ln_call.1} parent=39 // pred_region
          %s472 = smul.u32 2, %s30
          %s474 = ssub.s32 256, 256
          %475 = vsyncadd %s465, %s474
          %s476 = smul.addr %s31, 2
          %s477 = sadd.s32 %s472, %s476
          %s478 = smul.addr %s477, 128
          %s479 = scalar_lea.hbm %s5, %s478
          %s480 = sshll.u32 %s468, 4
          %s481 = int_to_ptr.vmem [resolvable:$true] %s480
          %486 = dma.vmem_to_hbm [thread:$0]  %s481, 256, %s479, %s465, 128, 128, 8
        $region68: #{_spiking_ln_call.1} parent=39 // pred_fallthru
          _
        // Predicated region
        $region69: #{_spiking_ln_call.1} parent=39 // pred_check
          %p487 = pneg %p206
        $region70: #{_spiking_ln_call.1} parent=39 // pred_check_branch
          %489 = sbr.rel (%p487) target = $region72
        $region71: #{_spiking_ln_call.1} parent=39 // pred_region
          %s490 = smul.u32 2, %s30
          %s492 = ssub.s32 256, 256
          %493 = vsyncadd [#allocation13], %s492
          %s494 = smul.addr %s490, 128
          %s495 = scalar_lea.hbm %s6, %s494
          %s496 = sshll.u32 [#allocation12], 4
          %s497 = int_to_ptr.vmem [resolvable:$true] %s496
          %502 = dma.vmem_to_hbm [thread:$0]  %s497, 256, %s495, [#allocation13], 128, 128, 8
        $region72: #{_spiking_ln_call.1} parent=39 // pred_fallthru
          _
        // Predicated region
        $region73: #{_spiking_ln_call.1} parent=39 // pred_check
          %p503 = pneg %p232
        $region74: #{_spiking_ln_call.1} parent=39 // pred_check_branch
          %505 = sbr.rel (%p503) target = $region76
        $region75: #{_spiking_ln_call.1} parent=39 // pred_region
          %s506 = smul.u32 2, %s30
          %s508 = ssub.s32 256, 256
          %509 = vsyncadd [#allocation13], %s508
          %s510 = smul.addr %s506, 128
          %s511 = scalar_lea.hbm %s7, %s510
          %s512 = sshll.u32 [#allocation14], 4
          %s513 = int_to_ptr.vmem [resolvable:$true] %s512
          %518 = dma.vmem_to_hbm [thread:$0]  %s513, 256, %s511, [#allocation13], 128, 128, 8
        $region76: #{_spiking_ln_call.1} parent=39 // pred_fallthru
          _
        // Predicated region
        $region77: #{_spiking_ln_call.1} parent=39 // pred_check
          %p519 = pneg %p206
        $region78: #{_spiking_ln_call.1} parent=39 // pred_check_branch
          %521 = sbr.rel (%p519) target = $region80
        $region79: #{_spiking_ln_call.1} parent=39 // pred_region
          %522 = dma.done [#allocation13], 256
        $region80: #{_spiking_ln_call.1} parent=39 // pred_fallthru
          _
        // Predicated region
        $region81: #{_spiking_ln_call.1} parent=39 // pred_check
          %p523 = pneg %p232
        $region82: #{_spiking_ln_call.1} parent=39 // pred_check_branch
          %525 = sbr.rel (%p523) target = $region84
        $region83: #{_spiking_ln_call.1} parent=39 // pred_region
          %526 = dma.done [#allocation13], 256
        $region84: #{_spiking_ln_call.1} parent=39 // pred_fallthru
          _
      $region40: #{_spiking_ln_call.1} parent=5 // pred_fallthru
        _
      %p527 = scmp.le.s32.totalorder 2, %s21
      // Predicated region
      $region85: #{_spiking_ln_call.1} parent=5 // pred_check
        %p528 = pneg %p527
      $region86: #{_spiking_ln_call.1} parent=5 // pred_check_branch
        %530 = sbr.rel (%p528) target = $region88
      $region87: #{_spiking_ln_call.1} parent=5 // pred_region
        %s531 = ssub.s32 %s21, 2
        // Predicated region
        $region89: #{_spiking_ln_call.1} parent=87 // pred_check
          %p532 = pneg %p186
        $region90: #{_spiking_ln_call.1} parent=87 // pred_check_branch
          %534 = sbr.rel (%p532) target = $region92
        $region91: #{_spiking_ln_call.1} parent=87 // pred_region
          %s535 = sand.u32 %s171, 1
          %s536 = scalar_lea.sflag [#allocation4], %s535
          %s537 = sand.u32 %s171, 1
          %s538 = smul.addr %s537, 16
          %s539 = scalar_lea.vmem [#allocation11], %s538
          %540 = dma.done %s536, 256
        $region92: #{_spiking_ln_call.1} parent=87 // pred_fallthru
          _
      $region88: #{_spiking_ln_call.1} parent=5 // pred_fallthru
        _
    $region6: #{_spiking_ln_call.1} parent=1 // loop_footer
      %s25 = sadd.s32 1, %s21
    $region7: #{_spiking_ln_call.1} parent=1 // loop_footer_branch
      %20 = sbr.rel target = $region3
    $region8: #{_spiking_ln_call.1} parent=1 // loop_exit
      _
    %541 = vsyncpa [#allocation3], 1
    %s542 = scalar_lea.sflag [#allocation3], 1
    %543 = vsyncpa %s542, 1
    %544 = vsyncpa [#allocation6], 1
    %545 = vsyncpa [#allocation10], 1
    %546 = vsyncpa [#allocation4], 1
    %s547 = scalar_lea.sflag [#allocation4], 1
    %548 = vsyncpa %s547, 1
    %549 = vsyncpa [#allocation13], 1

</llo_original>
